<compile_context>
chip_gen: v6e
topology: v6e:2x2x1
jax: 0.10.0
libtpu: 0.0.40
codegen_flags: <defaults>
</compile_context>

<pallas_src>
import functools

import jax
import jax.numpy as jnp
from jax import lax
from jax.experimental import pallas as pl
from jax.experimental.pallas import tpu as pltpu


# ---------------------------------------------------------------------------
# Helpers
# ---------------------------------------------------------------------------
@functools.lru_cache(maxsize=None)
def _vmem_limit_bytes():
    """~75% of per-core VMEM (48 MiB on v7x, 96 MiB on v5e/v6e), with fallback."""
    try:
        info = pltpu.get_tpu_info()
        cap = getattr(info, "vmem_capacity_bytes", None)
        if cap:
            return min(int(cap) * 3 // 4, 96 * 1024 * 1024)
    except Exception:
        pass
    return 48 * 1024 * 1024


def _pick_tile(dim, candidates, fits=None):
    """Largest candidate tile that divides `dim` (and satisfies `fits`), else
    the largest dividing candidate, else the full dim (always a legal block)."""
    for c in candidates:
        if dim >= c and dim % c == 0 and (fits is None or fits(c)):
            return c
    for c in candidates:
        if dim >= c and dim % c == 0:
            return c
    return dim


# ---------------------------------------------------------------------------
# Tiled linear:  y = x @ w_t + b      (x: [M, K], w_t: [K, N], b: [1, N])
# ---------------------------------------------------------------------------
def _linear_kernel(x_ref, w_ref, b_ref, o_ref, acc_ref):
    k = pl.program_id(2)

    @pl.when(k == 0)
    def _():
        acc_ref[...] = jnp.zeros_like(acc_ref)

    # Operands stay in their input dtype (bf16 on the MXU if given bf16);
    # accumulation is f32.
    acc_ref[...] += jnp.dot(x_ref[...], w_ref[...],
                            preferred_element_type=jnp.float32)

    @pl.when(k == pl.num_programs(2) - 1)
    def _():
        o_ref[...] = (acc_ref[...] + b_ref[...].astype(jnp.float32)).astype(o_ref.dtype)


def pallas_linear(x, w_t, b):
    """x: [M, K], w_t: [K, N] (pre-transposed), b: [1, N] -> [M, N]."""
    M, K = x.shape
    N = w_t.shape[1]
    itemsize = x.dtype.itemsize
    budget = _vmem_limit_bytes() // 2  # leave headroom for Mosaic scratch

    tn = _pick_tile(N, (512, 256, 128))
    tk = _pick_tile(K, (1024, 512, 256, 128))

    def fits(tm_c):
        # 2x buffered x/w/b blocks + resident out block + f32 accumulator.
        blocks = 2 * itemsize * (tm_c * tk + tk * tn + tn)
        blocks += itemsize * tm_c * tn + 4 * tm_c * tn
        return blocks <= budget

    tm = _pick_tile(M, (1024, 512, 256, 128, 64, 32, 16, 8), fits)

    cost = pl.CostEstimate(
        flops=2 * M * N * K,
        transcendentals=0,
        bytes_accessed=itemsize * (M * K + K * N + N + M * N),
    )

    return pl.pallas_call(
        _linear_kernel,
        out_shape=jax.ShapeDtypeStruct((M, N), x.dtype),
        grid=(M // tm, N // tn, K // tk),
        in_specs=[
            pl.BlockSpec((tm, tk), lambda i, j, k: (i, k)),
            pl.BlockSpec((tk, tn), lambda i, j, k: (k, j)),
            pl.BlockSpec((1, tn), lambda i, j, k: (0, j)),
        ],
        out_specs=pl.BlockSpec((tm, tn), lambda i, j, k: (i, j)),
        scratch_shapes=[pltpu.VMEM((tm, tn), jnp.float32)],
        compiler_params=pltpu.CompilerParams(
            dimension_semantics=("parallel", "parallel", "arbitrary"),
            vmem_limit_bytes=_vmem_limit_bytes(),
        ),
        cost_estimate=cost,
    )(x, w_t, b)


# ---------------------------------------------------------------------------
# Attention, full-weights path (module semantics: returns [B, H, Sq, Sk]).
# Heads stay packed along the feature dim; per-head ref slices + per-head
# lane stores (no concat epilogue, no full-tile f32 up-cast).
# ---------------------------------------------------------------------------
def _attention_kernel_full(q_ref, k_ref, v_ref, o_ref, w_ref, *,
                           num_heads, depth, scale):
    # Static unroll over heads (num_heads is a small compile-time constant;
    # per-head stores keep live ranges bounded, and lane-dim slicing stays
    # static so Mosaic lowering is safe).
    for h in range(num_heads):
        lo = h * depth
        qh = q_ref[0, :, lo:lo + depth] * scale      # scale folded into q (input dtype)
        kh = k_ref[0, :, lo:lo + depth]              # [Sk, depth]
        vh = v_ref[0, :, lo:lo + depth]              # [Sk, depth]

        # q @ k^T without materializing a transpose; f32 accumulation.
        s = lax.dot_general(qh, kh, (((1,), (1,)), ((), ())),
                            preferred_element_type=jnp.float32)        # [tq, Sk]
        m = jnp.max(s, axis=-1, keepdims=True)
        p = jnp.exp(s - m)
        denom = jnp.sum(p, axis=-1, keepdims=True)
        w = p / denom   # exact normalization: returned weights sum to 1 per row
        # TODO(synk): dropout on `w` is identity (eval mode); mask=None only.

        o_ref[0, :, lo:lo + depth] = jnp.dot(
            w.astype(vh.dtype), vh,
            preferred_element_type=jnp.float32).astype(o_ref.dtype)
        w_ref[0, h] = w.astype(w_ref.dtype)


def pallas_attention_full(q, k, v, num_heads):
    """q: [B, Sq, d_model], k/v: [B, Sk, d_model] (heads packed in feature dim).
    Returns (out [B, Sq, d_model], weights [B, H, Sq, Sk])."""
    B, Sq, d_model = q.shape
    Sk = k.shape[1]
    depth = d_model // num_heads
    scale = 1.0 / (depth ** 0.5)
    itemsize = q.dtype.itemsize
    budget = _vmem_limit_bytes() // 2

    def fits(tq_c):
        # 2x buffered q/k/v/o/w blocks (weights block dominates at long Sk).
        blocks = 2 * itemsize * (2 * tq_c * d_model + 2 * Sk * d_model
                                 + num_heads * tq_c * Sk)
        return blocks <= budget

    tq = _pick_tile(Sq, (512, 256, 128, 64, 32, 16, 8), fits)

    kernel = functools.partial(_attention_kernel_full, num_heads=num_heads,
                               depth=depth, scale=scale)
    cost = pl.CostEstimate(
        flops=4 * B * Sq * Sk * d_model,
        transcendentals=B * num_heads * Sq * Sk,
        bytes_accessed=itemsize * (2 * B * Sq * d_model + 2 * B * Sk * d_model
                                   + B * num_heads * Sq * Sk),
    )

    out, weights = pl.pallas_call(
        kernel,
        out_shape=(
            jax.ShapeDtypeStruct((B, Sq, d_model), q.dtype),
            jax.ShapeDtypeStruct((B, num_heads, Sq, Sk), q.dtype),
        ),
        grid=(B, Sq // tq),
        in_specs=[
            pl.BlockSpec((1, tq, d_model), lambda b, i: (b, i, 0)),
            pl.BlockSpec((1, Sk, d_model), lambda b, i: (b, 0, 0)),
            pl.BlockSpec((1, Sk, d_model), lambda b, i: (b, 0, 0)),
        ],
        out_specs=(
            pl.BlockSpec((1, tq, d_model), lambda b, i: (b, i, 0)),
            pl.BlockSpec((1, num_heads, tq, Sk), lambda b, i: (b, 0, i, 0)),
        ),
        compiler_params=pltpu.CompilerParams(
            dimension_semantics=("parallel", "parallel"),
            vmem_limit_bytes=_vmem_limit_bytes(),
        ),
        cost_estimate=cost,
    )(q, k, v)
    return out, weights


# ---------------------------------------------------------------------------
# Attention, flash path (need_weights=False): KV-tiled online softmax.
# VMEM bounded by O(tq*tkv + tkv*d_model); no [B,H,Sq,Sk] HBM write.
# ---------------------------------------------------------------------------
def _attention_kernel_flash(q_ref, k_ref, v_ref, o_ref, m_scr, l_scr, acc_scr, *,
                            num_heads, depth, scale):
    kv = pl.program_id(2)

    @pl.when(kv == 0)
    def _():
        m_scr[...] = jnp.full(m_scr.shape, -jnp.inf, jnp.float32)
        l_scr[...] = jnp.zeros(l_scr.shape, jnp.float32)
        acc_scr[...] = jnp.zeros(acc_scr.shape, jnp.float32)

    for h in range(num_heads):
        lo = h * depth
        qh = q_ref[0, :, lo:lo + depth] * scale      # [tq, depth]
        kh = k_ref[0, :, lo:lo + depth]              # [tkv, depth]
        vh = v_ref[0, :, lo:lo + depth]              # [tkv, depth]

        s = lax.dot_general(qh, kh, (((1,), (1,)), ((), ())),
                            preferred_element_type=jnp.float32)        # [tq, tkv]
        m_prev = m_scr[h]                                               # [tq, 1]
        m_new = jnp.maximum(m_prev, jnp.max(s, axis=-1, keepdims=True))
        alpha = jnp.exp(m_prev - m_new)
        p = jnp.exp(s - m_new)
        # TODO(synk): dropout on attention weights is identity (eval mode).
        l_scr[h] = alpha * l_scr[h] + jnp.sum(p, axis=-1, keepdims=True)
        pv = jnp.dot(p.astype(vh.dtype), vh, preferred_element_type=jnp.float32)
        acc_scr[:, lo:lo + depth] = alpha * acc_scr[:, lo:lo + depth] + pv
        m_scr[h] = m_new

    @pl.when(kv == pl.num_programs(2) - 1)
    def _():
        for h in range(num_heads):
            lo = h * depth
            inv = pl.reciprocal(l_scr[h], approx=True)                  # EUP slot
            o_ref[0, :, lo:lo + depth] = (acc_scr[:, lo:lo + depth] * inv
                                          ).astype(o_ref.dtype)


def pallas_attention_flash(q, k, v, num_heads):
    B, Sq, d_model = q.shape
    Sk = k.shape[1]
    depth = d_model // num_heads
    scale = 1.0 / (depth ** 0.5)
    itemsize = q.dtype.itemsize
    budget = _vmem_limit_bytes() // 2

    tq = _pick_tile(Sq, (512, 256, 128, 64, 32, 16, 8))

    def fits(tkv_c):
        blocks = 2 * itemsize * (2 * tq * d_model + 2 * tkv_c * d_model)
        blocks += 4 * (tq * d_model + 2 * num_heads * tq)   # f32 acc/m/l scratch
        return blocks <= budget

    tkv = _pick_tile(Sk, (512, 256, 128, 64, 32, 16, 8), fits)

    kernel = functools.partial(_attention_kernel_flash, num_heads=num_heads,
                               depth=depth, scale=scale)
    cost = pl.CostEstimate(
        flops=4 * B * Sq * Sk * d_model,
        transcendentals=B * num_heads * Sq * Sk,
        bytes_accessed=itemsize * (2 * B * Sq * d_model + 2 * B * Sk * d_model),
    )

    return pl.pallas_call(
        kernel,
        out_shape=jax.ShapeDtypeStruct((B, Sq, d_model), q.dtype),
        grid=(B, Sq // tq, Sk // tkv),
        in_specs=[
            pl.BlockSpec((1, tq, d_model), lambda b, i, j: (b, i, 0)),
            pl.BlockSpec((1, tkv, d_model), lambda b, i, j: (b, j, 0)),
            pl.BlockSpec((1, tkv, d_model), lambda b, i, j: (b, j, 0)),
        ],
        out_specs=pl.BlockSpec((1, tq, d_model), lambda b, i, j: (b, i, 0)),
        scratch_shapes=[
            pltpu.VMEM((num_heads, tq, 1), jnp.float32),   # running max
            pltpu.VMEM((num_heads, tq, 1), jnp.float32),   # running sum
            pltpu.VMEM((tq, d_model), jnp.float32),        # output accumulator
        ],
        compiler_params=pltpu.CompilerParams(
            dimension_semantics=("parallel", "parallel", "arbitrary"),
            vmem_limit_bytes=_vmem_limit_bytes(),
        ),
        cost_estimate=cost,
    )(q, k, v)


# ---------------------------------------------------------------------------
# Parameters
# ---------------------------------------------------------------------------
def init_mha_params(key, d_model, dtype=jnp.float32):
    """Deterministic init mimicking PyTorch nn.Linear default U[-1/sqrt(in), 1/sqrt(in)].
    Stored in PyTorch layout: w [out, in], b [out]."""
    bound = 1.0 / (d_model ** 0.5)
    names = ["wq", "wk", "wv", "dense"]
    params = {}
    keys = jax.random.split(key, 2 * len(names))
    for i, name in enumerate(names):
        wk_, bk_ = keys[2 * i], keys[2 * i + 1]
        params[name] = {
            "w": jax.random.uniform(wk_, (d_model, d_model), dtype, -bound, bound),
            "b": jax.random.uniform(bk_, (d_model,), dtype, -bound, bound),
        }
    return params


def prepare_params(params):
    """One-time parameter prep (hoisted out of the forward path):
    pre-transposed weights [K, N], biases [1, N], and a concatenated
    QKV weight/bias for the self-attention fused-projection fast path."""
    prepped = {}
    for name in ("wq", "wk", "wv", "dense"):
        prepped[name] = {"w_t": params[name]["w"].T,
                         "b": params[name]["b"][None, :]}
    prepped["wqkv"] = {
        "w_t": jnp.concatenate([prepped[n]["w_t"] for n in ("wq", "wk", "wv")],
                               axis=1),
        "b": jnp.concatenate([prepped[n]["b"] for n in ("wq", "wk", "wv")],
                             axis=1),
    }
    return prepped


# ---------------------------------------------------------------------------
# MultiHeadAttention forward
# ---------------------------------------------------------------------------
def multi_head_attention(prepped, query, key, value, num_heads, need_weights=True):
    B, Sq, d_model = query.shape
    Sk = key.shape[1]

    if key is query and value is query:
        # Self-attention fast path: single wide matmul with concatenated weights
        # (no activation stacking, wider N for better MXU tiling).
        qkv = pallas_linear(query.reshape(-1, d_model),
                            prepped["wqkv"]["w_t"], prepped["wqkv"]["b"])
        q = qkv[:, 0 * d_model:1 * d_model].reshape(B, Sq, d_model)
        k = qkv[:, 1 * d_model:2 * d_model].reshape(B, Sq, d_model)
        v = qkv[:, 2 * d_model:3 * d_model].reshape(B, Sq, d_model)
    else:
        q = pallas_linear(query.reshape(-1, d_model),
                          prepped["wq"]["w_t"], prepped["wq"]["b"]).reshape(B, Sq, d_model)
        k = pallas_linear(key.reshape(-1, d_model),
                          prepped["wk"]["w_t"], prepped["wk"]["b"]).reshape(B, Sk, d_model)
        v = pallas_linear(value.reshape(-1, d_model),
                          prepped["wv"]["w_t"], prepped["wv"]["b"]).reshape(B, Sk, d_model)

    # Heads stay packed in the feature dim: split/merge handled inside the kernel.
    if need_weights:
        out, attn_weights = pallas_attention_full(q, k, v, num_heads)
    else:
        out = pallas_attention_flash(q, k, v, num_heads)
        attn_weights = None

    out = pallas_linear(out.reshape(-1, d_model),
                        prepped["dense"]["w_t"], prepped["dense"]["b"])
    return out.reshape(B, Sq, d_model), attn_weights


# ---------------------------------------------------------------------------
# Reference (pure JAX) for sanity checking
# ---------------------------------------------------------------------------
def reference_mha(params, query, key, value, num_heads):
    B, Sq, d_model = query.shape
    Sk = key.shape[1]
    depth = d_model // num_heads

    def lin(x, p):
        return x @ p["w"].T + p["b"]

    def split(x, S):
        return jnp.transpose(x.reshape(B, S, num_heads, depth), (0, 2, 1, 3))

    q = split(lin(query, params["wq"]), Sq)
    k = split(lin(key, params["wk"]), Sk)
    v = split(lin(value, params["wv"]), Sk)

    scores = jnp.einsum("bhqd,bhkd->bhqk", q, k) / (depth ** 0.5)
    w = jax.nn.softmax(scores, axis=-1)
    o = jnp.einsum("bhqk,bhkd->bhqd", w, v)
    o = jnp.transpose(o, (0, 2, 1, 3)).reshape(B, Sq, d_model)
    return lin(o, params["dense"]), w


if __name__ == "__main__":
    B, S, d_model, num_heads = 2, 8, 32, 4

    root = jax.random.PRNGKey(0)
    k_param, k_q, k_k, k_v = jax.random.split(root, 4)
    raw_params = init_mha_params(k_param, d_model)
    params = prepare_params(raw_params)

    query = jax.random.normal(k_q, (B, S, d_model), jnp.float32)
    key = jax.random.normal(k_k, (B, S, d_model), jnp.float32)
    value = jax.random.normal(k_v, (B, S, d_model), jnp.float32)

    # 1) Cross-attention (separate projections) + full attention-weights output.
    out, attn_w = multi_head_attention(params, query, key, value, num_heads,
                                       need_weights=True)
    out = jax.block_until_ready(out)
    attn_w = jax.block_until_ready(attn_w)

    ref_out, ref_w = reference_mha(raw_params, query, key, value, num_heads)
    assert out.shape == (B, S, d_model)
    assert attn_w.shape == (B, num_heads, S, S)
    assert jnp.allclose(out, ref_out, atol=2e-3, rtol=2e-3)
    assert jnp.allclose(attn_w, ref_w, atol=2e-3, rtol=2e-3)

    # 2) Flash (KV-tiled online softmax) path, weights not materialized.
    out_flash, w_none = multi_head_attention(params, query, key, value, num_heads,
                                             need_weights=False)
    out_flash = jax.block_until_ready(out_flash)
    assert w_none is None
    assert jnp.allclose(out_flash, ref_out, atol=5e-3, rtol=5e-3)

    # 3) Self-attention: fused QKV projection (single concatenated-weight matmul).
    out_self, w_self = multi_head_attention(params, query, query, query, num_heads)
    out_self = jax.block_until_ready(out_self)
    ref_out_self, ref_w_self = reference_mha(raw_params, query, query, query, num_heads)
    assert jnp.allclose(out_self, ref_out_self, atol=2e-3, rtol=2e-3)
    assert jnp.allclose(w_self, ref_w_self, atol=2e-3, rtol=2e-3)

    print("KERNEL_OK")
</pallas_src>

<mosaic_0001>
module attributes {stable_mosaic.version = 11 : i64} {
  func.func @_linear_kernel(%arg0: i32, %arg1: i32, %arg2: i32, %arg3: memref<16x32xf32, #tpu.memory_space<vmem>>, %arg4: memref<32x32xf32, #tpu.memory_space<vmem>>, %arg5: memref<1x32xf32, #tpu.memory_space<vmem>>, %arg6: memref<16x32xf32, #tpu.memory_space<vmem>>, %arg7: memref<16x32xf32, #tpu.memory_space<vmem>>) attributes {dimension_semantics = [#tpu.dimension_semantics<parallel>, #tpu.dimension_semantics<parallel>, #tpu.dimension_semantics<arbitrary>], iteration_bounds = array<i64: 1, 1, 1>, scalar_prefetch = 0 : i64, scratch_operands = 1 : i64, tpu.core_type = #tpu.core_type<tc>, window_params = [{transform_indices = @transform_0, window_bounds = array<i64: 16, 32>}, {transform_indices = @transform_1, window_bounds = array<i64: 32, 32>}, {transform_indices = @transform_2, window_bounds = array<i64: 1, 32>}, {transform_indices = @transform_3, window_bounds = array<i64: 16, 32>}]} {
    %c0_i32 = arith.constant 0 : i32
    %0 = arith.cmpi eq, %arg2, %c0_i32 : i32
    %1 = arith.extui %0 : i1 to i32
    %c0_i32_0 = arith.constant 0 : i32
    %2 = arith.cmpi ne, %1, %c0_i32_0 : i32
    scf.if %2 {
      %cst_10 = arith.constant 0.000000e+00 : f32
      %12 = vector.broadcast %cst_10 : f32 to vector<16x32xf32>
      %c0_11 = arith.constant 0 : index
      %c0_12 = arith.constant 0 : index
      %13 = vector.load %arg7[%c0_11, %c0_12] : memref<16x32xf32, #tpu.memory_space<vmem>>, vector<16x32xf32>
      tpu.vector_store %arg7[%c0_11, %c0_12], %12 {strides = array<i32>} : memref<16x32xf32, #tpu.memory_space<vmem>>, vector<16x32xf32>,
    } else {
    }
    %c0 = arith.constant 0 : index
    %c0_1 = arith.constant 0 : index
    %3 = vector.load %arg7[%c0, %c0_1] : memref<16x32xf32, #tpu.memory_space<vmem>>, vector<16x32xf32>
    %c0_2 = arith.constant 0 : index
    %c0_3 = arith.constant 0 : index
    %4 = vector.load %arg3[%c0_2, %c0_3] : memref<16x32xf32, #tpu.memory_space<vmem>>, vector<16x32xf32>
    %c0_4 = arith.constant 0 : index
    %c0_5 = arith.constant 0 : index
    %5 = vector.load %arg4[%c0_4, %c0_5] : memref<32x32xf32, #tpu.memory_space<vmem>>, vector<32x32xf32>
    %cst = arith.constant dense<0.000000e+00> : vector<16x32xf32>
    %6 = tpu.matmul %4, %5, %cst {dimension_numbers = #tpu.dot_dimension_numbers<[1], [0], [0], [1], [0, 0, 1, 1], [], []>} : vector<16x32xf32>, vector<32x32xf32>, vector<16x32xf32> -> vector<16x32xf32>
    %7 = arith.addf %3, %6 : vector<16x32xf32>
    %c0_6 = arith.constant 0 : index
    %c0_7 = arith.constant 0 : index
    %8 = vector.load %arg7[%c0_6, %c0_7] : memref<16x32xf32, #tpu.memory_space<vmem>>, vector<16x32xf32>
    tpu.vector_store %arg7[%c0_6, %c0_7], %7 {strides = array<i32>} : memref<16x32xf32, #tpu.memory_space<vmem>>, vector<16x32xf32>,
    %c0_i32_8 = arith.constant 0 : i32
    %9 = arith.cmpi eq, %arg2, %c0_i32_8 : i32
    %10 = arith.extui %9 : i1 to i32
    %c0_i32_9 = arith.constant 0 : i32
    %11 = arith.cmpi ne, %10, %c0_i32_9 : i32
    scf.if %11 {
      %c0_10 = arith.constant 0 : index
      %c0_11 = arith.constant 0 : index
      %12 = vector.load %arg7[%c0_10, %c0_11] : memref<16x32xf32, #tpu.memory_space<vmem>>, vector<16x32xf32>
      %c0_12 = arith.constant 0 : index
      %c0_13 = arith.constant 0 : index
      %13 = vector.load %arg5[%c0_12, %c0_13] : memref<1x32xf32, #tpu.memory_space<vmem>>, vector<1x32xf32>
      %14 = vector.broadcast %13 : vector<1x32xf32> to vector<16x32xf32>
      %15 = arith.addf %12, %14 : vector<16x32xf32>
      %c0_14 = arith.constant 0 : index
      %c0_15 = arith.constant 0 : index
      %16 = vector.load %arg6[%c0_14, %c0_15] : memref<16x32xf32, #tpu.memory_space<vmem>>, vector<16x32xf32>
      tpu.vector_store %arg6[%c0_14, %c0_15], %15 {strides = array<i32>} : memref<16x32xf32, #tpu.memory_space<vmem>>, vector<16x32xf32>,
    } else {
    }
    return
  }
  func.func @transform_0(%arg0: i32, %arg1: i32, %arg2: i32) -> (i32, i32) {
    %c0_i32 = arith.constant 0 : i32
    return %arg0, %arg2 : i32, i32
  }
  func.func @transform_1(%arg0: i32, %arg1: i32, %arg2: i32) -> (i32, i32) {
    %c0_i32 = arith.constant 0 : i32
    return %arg2, %arg1 : i32, i32
  }
  func.func @transform_2(%arg0: i32, %arg1: i32, %arg2: i32) -> (i32, i32) {
    %c0_i32 = arith.constant 0 : i32
    %c0_i32_0 = arith.constant 0 : i32
    return %c0_i32, %arg1 : i32, i32
  }
  func.func @transform_3(%arg0: i32, %arg1: i32, %arg2: i32) -> (i32, i32) {
    %c0_i32 = arith.constant 0 : i32
    return %arg0, %arg1 : i32, i32
  }
}

</mosaic_0001>

<llo_original>
// kernel: tpu_custom_call.1
$region0: #{tpu_custom_call.1}
  #allocation0 [shape = 'u32[]', space=smem, size = 0x4, offset = 0x4, fixed_abs, tag = 'smem constant byte address 0x4 - core index']
  #allocation1 [shape = 'u32[144,128]{1,0:T(1,128)}', space=vmem, size = 0x12000, scoped, tag = 'internal scratch']
  #allocation2 [shape = 'f32[16,32]{1,0:T(8,128)}', space=vmem, size = 0x2000, scoped, tag = 'scratch operand']
  %s0 = inlined_call_operand.hbm [shape: f32[16,32], index: 0, kind: input, shape index: {}]
  %s1 = inlined_call_operand.hbm [shape: f32[32,32], index: 1, kind: input, shape index: {}]
  %s2 = inlined_call_operand.vmem [shape: f32[1,32], index: 2, kind: input, shape index: {}]
  %s3 = inlined_call_operand.hbm [shape: f32[16,32], index: 3, kind: output, shape index: {}]
  %s4 = sld [smem:[#allocation0]]
  $region38: #{tpu_custom_call.1} parent=0
    _
  %s6 = ssub.s32 1, %s4
  %s7 = scalar_select 0, %s6, %s4
  $region1: #{tpu_custom_call.1} parent=0
    #allocation3 [shape = 'u8[8192]{0}', space=vmem, size = 0x2000, scoped, tag = 'input window, operand 0, single buffered']
    #allocation4 [shape = 's32[1]{0}', space=sflag, size = 0x4, scoped, tag = 'scoped memory for tpu_custom_call.1']
    #allocation5 [shape = 's32[1]{0}', space=sflag, size = 0x4, scoped, tag = 'scoped memory for tpu_custom_call.1']
    #allocation6 [shape = 'u8[16384]{0}', space=vmem, size = 0x4000, scoped, tag = 'input window, operand 1, single buffered']
    #allocation7 [shape = 's32[1]{0}', space=sflag, size = 0x4, scoped, tag = 'scoped memory for tpu_custom_call.1']
    #allocation8 [shape = 'u8[8192]{0}', space=vmem, size = 0x2000, scoped, tag = 'output window, operand 0, single buffered']
    %8 = vsyncpa [#allocation4], 0
    %9 = vsyncpa [#allocation7], 0
    %10 = vsyncpa [#allocation5], 0
    // Predicated region
    $region2: #{tpu_custom_call.1} parent=1 // pred_check
      _
    $region3: #{tpu_custom_call.1} parent=1 // pred_check_branch
      %12 = sbr.rel (0) target = $region5
    $region4: #{tpu_custom_call.1} parent=1 // pred_region
      %s14 = ssub.s32 256, 256
      %15 = vsyncadd [#allocation4], %s14
      %s16 = sshll.u32 [#allocation3], 4
      %s17 = int_to_ptr.vmem [resolvable:$true] %s16
      %22 = dma.hbm_to_vmem [thread:$0]  %s0, 256, %s17, [#allocation4], 128, 128, 8
    $region5: #{tpu_custom_call.1} parent=1 // pred_fallthru
      _
    // Predicated region
    $region6: #{tpu_custom_call.1} parent=1 // pred_check
      _
    $region7: #{tpu_custom_call.1} parent=1 // pred_check_branch
      %24 = sbr.rel (0) target = $region9
    $region8: #{tpu_custom_call.1} parent=1 // pred_region
      %s26 = ssub.s32 512, 512
      %27 = vsyncadd [#allocation7], %s26
      %s28 = sshll.u32 [#allocation6], 4
      %s29 = int_to_ptr.vmem [resolvable:$true] %s28
      %34 = dma.hbm_to_vmem [thread:$0]  %s1, 512, %s29, [#allocation7], 128, 128, 8
    $region9: #{tpu_custom_call.1} parent=1 // pred_fallthru
      _
    // Predicated region
    $region10: #{tpu_custom_call.1} parent=1 // pred_check
      _
    $region11: #{tpu_custom_call.1} parent=1 // pred_check_branch
      %36 = sbr.rel (0) target = $region13
    $region12: #{tpu_custom_call.1} parent=1 // pred_region
      _
    $region13: #{tpu_custom_call.1} parent=1 // pred_fallthru
      _
    // Predicated region
    $region14: #{tpu_custom_call.1} parent=1 // pred_check
      _
    $region15: #{tpu_custom_call.1} parent=1 // pred_check_branch
      %38 = sbr.rel (0) target = $region17
    $region16: #{tpu_custom_call.1} parent=1 // pred_region
      %39 = dma.done [#allocation4], 256
    $region17: #{tpu_custom_call.1} parent=1 // pred_fallthru
      _
    // Predicated region
    $region18: #{tpu_custom_call.1} parent=1 // pred_check
      _
    $region19: #{tpu_custom_call.1} parent=1 // pred_check_branch
      %41 = sbr.rel (0) target = $region21
    $region20: #{tpu_custom_call.1} parent=1 // pred_region
      %42 = dma.done [#allocation7], 512
    $region21: #{tpu_custom_call.1} parent=1 // pred_fallthru
      _
    %p43 = scmp.eq.s32.totalorder 0, 0
    // Predicated region
    $region22: #{tpu_custom_call.1} parent=1 // pred_check
      %p44 = pneg %p43
    $region23: #{tpu_custom_call.1} parent=1 // pred_check_branch
      %46 = sbr.rel (%p44) target = $region25
    $region24: #{tpu_custom_call.1} parent=1 // pred_region
      %vm47 = vcmask 261120
      %48 = vst.msk [vmem:[#allocation2] sm:$0xff] %vm47, 0.0
      %49 = vst.msk [vmem:[#allocation2 + $0x8] sm:$0xff] %vm47, 0.0
    $region25: #{tpu_custom_call.1} parent=1 // pred_fallthru
      _
    %v50 = vld [vmem:[#allocation2] sm:$0xff]
    %v51 = vld [vmem:[#allocation2 + $0x8] sm:$0xff]
    %v52 = vld [vmem:[#allocation3] sm:$0xff]
    %v53 = vld [vmem:[#allocation3 + $0x8] sm:$0xff]
    %v54 = vld [vmem:[#allocation6] sm:$0xff]
    %v55 = vld [vmem:[#allocation6 + $0x8] sm:$0xff]
    %v56 = vld [vmem:[#allocation6 + $0x10] sm:$0xff]
    %v57 = vld [vmem:[#allocation6 + $0x18] sm:$0xff]
    %vm58 = vcmask 261120
    %v60 = vsel %vm58, %v52, 0
    %v63 = vsel %vm58, %v53, 0
    %65 = vmatprep.subr.mxu0 0.0
    %66 = vmatpush1.msra.mxu0 0.0
    %67 = vmatprep.subr.mxu0 0.0
    %68 = vmatpush1.msra.mxu0 0.0
    %69 = vmatprep.subr.mxu0 0.0
    %70 = vmatpush1.msra.mxu0 0.0
    %71 = vmatprep.subr.mxu0 0.0
    %72 = vmatpush1.msra.mxu0 0.0
    %73 = vmatprep.subr.mxu0 0.0
    %74 = vmatpush1.msra.mxu0 0.0
    %75 = vmatprep.subr.mxu0 0.0
    %76 = vmatpush1.msra.mxu0 0.0
    %77 = vmatprep.subr.mxu0 0.0
    %78 = vmatpush1.msra.mxu0 0.0
    %79 = vmatprep.subr.mxu0 0.0
    %80 = vmatpush1.msra.mxu0 0.0
    %81 = vmatprep.subr.mxu0 0.0
    %82 = vmatpush1.msra.mxu0 0.0
    %83 = vmatprep.subr.mxu0 0.0
    %84 = vmatpush1.msra.mxu0 0.0
    %85 = vmatprep.subr.mxu0 0.0
    %86 = vmatpush1.msra.mxu0 0.0
    %87 = vmatprep.subr.mxu0 0.0
    %88 = vmatpush1.msra.mxu0 0.0
    %89 = vmatprep.subr.mxu0 0.0
    %90 = vmatpush1.msra.mxu0 %v57
    %91 = vmatprep.subr.mxu0 0.0
    %92 = vmatpush1.msra.mxu0 %v56
    %93 = vmatprep.subr.mxu0 0.0
    %94 = vmatpush1.msra.mxu0 %v55
    %95 = vmatprep.subr.mxu0 0.0
    %96 = vmatpush1.msra.mxu0 %v54
    %97 = vmatprep.subr.mxu0 0.0
    %98 = vmatpush2.msra.mxu0 0.0
    %99 = vmatprep.subr.mxu0 0.0
    %100 = vmatpush2.msra.mxu0 0.0
    %101 = vmatprep.subr.mxu0 0.0
    %102 = vmatpush2.msra.mxu0 0.0
    %103 = vmatprep.subr.mxu0 0.0
    %104 = vmatpush2.msra.mxu0 0.0
    %105 = vmatprep.subr.mxu0 0.0
    %106 = vmatpush2.msra.mxu0 0.0
    %107 = vmatprep.subr.mxu0 0.0
    %108 = vmatpush2.msra.mxu0 0.0
    %109 = vmatprep.subr.mxu0 0.0
    %110 = vmatpush2.msra.mxu0 0.0
    %111 = vmatprep.subr.mxu0 0.0
    %112 = vmatpush2.msra.mxu0 0.0
    %113 = vmatprep.subr.mxu0 0.0
    %114 = vmatpush2.msra.mxu0 0.0
    %115 = vmatprep.subr.mxu0 0.0
    %116 = vmatpush2.msra.mxu0 0.0
    %117 = vmatprep.subr.mxu0 0.0
    %118 = vmatpush2.msra.mxu0 0.0
    %119 = vmatprep.subr.mxu0 0.0
    %120 = vmatpush2.msra.mxu0 0.0
    %121 = vmatprep.subr.mxu0 0.0
    %122 = vmatpush2.msra.mxu0 0.0
    %123 = vmatprep.subr.mxu0 0.0
    %124 = vmatpush2.msra.mxu0 0.0
    %125 = vmatprep.subr.mxu0 0.0
    %126 = vmatpush2.msra.mxu0 0.0
    %127 = vmatprep.subr.mxu0 0.0
    %128 = vmatpush2.msra.mxu0 0.0
    %129 = vmatprep.mubr.f32.mxu0 0.0
    %130 = vmatmul.mubr.f32.gmra.mxu0 %v60
    %v131 = vpop.f32.mrf.mxu0
    %v132 = vadd.f32 0.0, %v131
    %v133 = vpop.f32.mrf.mxu0
    %134 = vmatprep.mubr.f32.mxu0 0.0
    %135 = vmatmul.mubr.f32.gmra.mxu0 %v63
    %v136 = vpop.f32.mrf.mxu0
    %v137 = vadd.f32 0.0, %v136
    %v138 = vpop.f32.mrf.mxu0
    %139 = vdwg.mxu0
    %v140 = vadd.f32 %v50, %v132
    %v141 = vadd.f32 %v51, %v137
    %142 = vst.msk [vmem:[#allocation2] sm:$0xff] %vm58, %v140
    %143 = vst.msk [vmem:[#allocation2 + $0x8] sm:$0xff] %vm58, %v141
    // Predicated region
    $region26: #{tpu_custom_call.1} parent=1 // pred_check
      %p144 = pneg %p43
    $region27: #{tpu_custom_call.1} parent=1 // pred_check_branch
      %146 = sbr.rel (%p144) target = $region29
    $region28: #{tpu_custom_call.1} parent=1 // pred_region
      %v147 = vld [vmem:[#allocation2] sm:$0xff]
      %v148 = vld [vmem:[#allocation2 + $0x8] sm:$0xff]
      %v149 = vld [vmem:[%s2] sm:$0x1]
      %v151 = vlaneseq
      %v152 = vshrl.u32 %v151, 7
      %v153 = vsub.s32 0, %v152
      %v154 = vrot.slane %v149, %v153
      %v156 = vadd.f32 %v147, %v154
      %v157 = vadd.f32 %v148, %v154
      %158 = vst.msk [vmem:[#allocation8] sm:$0xff] %vm58, %v156
      %159 = vst.msk [vmem:[#allocation8 + $0x8] sm:$0xff] %vm58, %v157
    $region29: #{tpu_custom_call.1} parent=1 // pred_fallthru
      _
    // Predicated region
    $region30: #{tpu_custom_call.1} parent=1 // pred_check
      _
    $region31: #{tpu_custom_call.1} parent=1 // pred_check_branch
      %161 = sbr.rel (0) target = $region33
    $region32: #{tpu_custom_call.1} parent=1 // pred_region
      %s163 = ssub.s32 256, 256
      %164 = vsyncadd [#allocation5], %s163
      %s165 = sshll.u32 [#allocation8], 4
      %s166 = int_to_ptr.vmem [resolvable:$true] %s165
      %171 = dma.vmem_to_hbm [thread:$0]  %s166, 256, %s3, [#allocation5], 128, 128, 8
    $region33: #{tpu_custom_call.1} parent=1 // pred_fallthru
      _
    // Predicated region
    $region34: #{tpu_custom_call.1} parent=1 // pred_check
      _
    $region35: #{tpu_custom_call.1} parent=1 // pred_check_branch
      %173 = sbr.rel (0) target = $region37
    $region36: #{tpu_custom_call.1} parent=1 // pred_region
      %174 = dma.done [#allocation5], 256
    $region37: #{tpu_custom_call.1} parent=1 // pred_fallthru
      _
    %175 = vsyncpa [#allocation4], 1
    %176 = vsyncpa [#allocation7], 1
    %177 = vsyncpa [#allocation5], 1

</llo_original>
